<compile_context>
chip_gen: v7x
topology: tpu7x:2x2x1
jax: 0.10.0
libtpu: 0.0.40
codegen_flags: <defaults>
</compile_context>

<pallas_src>
import functools

import jax
import jax.numpy as jnp
from jax import lax
from jax.experimental import pallas as pl
from jax.experimental.pallas import tpu as pltpu


def _round_up(n, m):
    return ((n + m - 1) // m) * m


def _mlp_kernel(x_ref,
                w1_ref, b1_ref,
                w2_ref, b2_ref,
                w3_ref, b3_ref,
                w4_ref, b4_ref,
                o_ref):
    # x_ref: (tb, in_dim) f32 block.  Every intermediate below is (features, tb),
    # i.e. batch on the lane (last) axis -> lane-dense vregs and unmasked stores.
    # w{i}: bf16, PyTorch layout (out_features, in_features); b{i}: f32 (out_features, 1).
    x = x_ref[...].astype(jnp.bfloat16)

    # Layer 1: h1 = W1 @ x^T, expressed by contracting dim 1 of BOTH operands so the
    # transposed activation is consumed by the matmul instead of being materialized
    # by a separate transpose pass.
    h = lax.dot_general(w1_ref[...], x, (((1,), (1,)), ((), ())),
                        preferred_element_type=jnp.float32)
    h = jnp.maximum(h + b1_ref[...], 0.0)

    h = jnp.dot(w2_ref[...], h.astype(jnp.bfloat16),
                preferred_element_type=jnp.float32)
    h = jnp.maximum(h + b2_ref[...], 0.0)

    h = jnp.dot(w3_ref[...], h.astype(jnp.bfloat16),
                preferred_element_type=jnp.float32)
    h = jnp.maximum(h + b3_ref[...], 0.0)

    # TODO(synk): layer 4 (M=2) could be moved off the MXU onto VPU+XLU for ~5-15% less
    # MXU work; kept as a dot for simplicity/robustness.
    h = jnp.dot(w4_ref[...], h.astype(jnp.bfloat16),
                preferred_element_type=jnp.float32)
    h = h + b4_ref[...]

    o_ref[...] = h.astype(o_ref.dtype)


@functools.partial(jax.jit, static_argnames=("block_b",))
def phishing_url_classifier(x, params, block_b=4096):
    """x: (B, input_dim) float32; params: PyTorch-layout w1..w4 (out,in), b1..b4 (out,1)."""
    B, in_dim = x.shape
    out_dim = params["w4"].shape[0]

    # Grid-first tiling: bounds padding waste to < 128*grid rows and guarantees grid >= 2
    # (so both v7x TensorCores get work) whenever B > 128.
    grid = max(1, pl.cdiv(B, block_b))
    if B > 128 and grid < 2:
        grid = 2
    tb = _round_up(pl.cdiv(B, grid), 128)
    b_pad = grid * tb

    if b_pad != B:
        x = jnp.pad(x, ((0, b_pad - B), (0, 0)))

    weights = (
        params["w1"].astype(jnp.bfloat16), params["b1"].astype(jnp.float32),
        params["w2"].astype(jnp.bfloat16), params["b2"].astype(jnp.float32),
        params["w3"].astype(jnp.bfloat16), params["b3"].astype(jnp.float32),
        params["w4"].astype(jnp.bfloat16), params["b4"].astype(jnp.float32),
    )

    def const_spec(arr):
        # Whole (tiny) array: DMA'd once, VMEM-resident across all grid steps.
        return pl.BlockSpec(arr.shape, lambda i: (0,) * arr.ndim)

    layer_flops = sum(2 * w.shape[0] * w.shape[1] for w in weights[::2])
    param_bytes = sum(int(w.size) * w.dtype.itemsize for w in weights)
    cost = pl.CostEstimate(
        flops=b_pad * layer_flops,
        transcendentals=0,
        bytes_accessed=4 * b_pad * (in_dim + out_dim) + param_bytes,
    )

    outT = pl.pallas_call(
        _mlp_kernel,
        out_shape=jax.ShapeDtypeStruct((out_dim, b_pad), jnp.float32),
        grid=(grid,),
        in_specs=[pl.BlockSpec((tb, in_dim), lambda i: (i, 0))]
                 + [const_spec(w) for w in weights],
        out_specs=pl.BlockSpec((out_dim, tb), lambda i: (0, i)),
        compiler_params=pltpu.CompilerParams(
            dimension_semantics=("parallel",)),
        cost_estimate=cost,
    )(x, *weights)

    # Slice off the padded columns first (tiny), then transpose to the module's (B, 2).
    return outT[:, :B].T


def init_params(key, input_dim):
    # Deterministic synthetic init (PyTorch-like uniform(-1/sqrt(fan_in), 1/sqrt(fan_in))),
    # stored in PyTorch layout: W (out_features, in_features), b (out_features, 1).
    dims = [(input_dim, 64), (64, 32), (32, 16), (16, 2)]
    params = {}
    keys = jax.random.split(key, 2 * len(dims))
    for i, (fan_in, fan_out) in enumerate(dims):
        bound = 1.0 / jnp.sqrt(float(fan_in))
        params[f"w{i+1}"] = jax.random.uniform(
            keys[2 * i], (fan_out, fan_in), jnp.float32, -bound, bound)
        params[f"b{i+1}"] = jax.random.uniform(
            keys[2 * i + 1], (fan_out, 1), jnp.float32, -bound, bound)
    return params


def reference_forward(x, p):
    # Pure-f32 reference of the PyTorch forward.
    h = jnp.maximum(x @ p["w1"].T + p["b1"].T, 0.0)
    h = jnp.maximum(h @ p["w2"].T + p["b2"].T, 0.0)
    h = jnp.maximum(h @ p["w3"].T + p["b3"].T, 0.0)
    return h @ p["w4"].T + p["b4"].T


if __name__ == "__main__":
    key = jax.random.PRNGKey(0)
    k_x, k_p, k_x2 = jax.random.split(key, 3)

    batch = 8
    input_dim = 16  # stands in for len(important_features)

    x = jax.random.normal(k_x, (batch, input_dim), dtype=jnp.float32)
    params = init_params(k_p, input_dim)

    out = jax.block_until_ready(phishing_url_classifier(x, params))
    ref = reference_forward(x, params)
    assert out.shape == (batch, 2)
    # bf16 MXU operands with f32 accumulation: compare to the f32 reference loosely.
    assert jnp.allclose(out, ref, atol=5e-2, rtol=5e-2), "mismatch vs reference"

    # Exercise the multi-tile grid path (grid-first padding, constant-index weights,
    # grid >= 2) at a non-multiple batch with a small block size.
    x2 = jax.random.normal(k_x2, (515, input_dim), dtype=jnp.float32)
    out2 = jax.block_until_ready(phishing_url_classifier(x2, params, block_b=256))
    ref2 = reference_forward(x2, params)
    assert out2.shape == (515, 2)
    assert jnp.allclose(out2, ref2, atol=5e-2, rtol=5e-2), "mismatch vs reference (tiled)"

    print("KERNEL_OK")
</pallas_src>

<mosaic_0001>
module attributes {stable_mosaic.version = 11 : i64} {
  func.func @_mlp_kernel(%arg0: i32, %arg1: memref<128x16xf32, #tpu.memory_space<vmem>>, %arg2: memref<64x16xbf16, #tpu.memory_space<vmem>>, %arg3: memref<64x1xf32, #tpu.memory_space<vmem>>, %arg4: memref<32x64xbf16, #tpu.memory_space<vmem>>, %arg5: memref<32x1xf32, #tpu.memory_space<vmem>>, %arg6: memref<16x32xbf16, #tpu.memory_space<vmem>>, %arg7: memref<16x1xf32, #tpu.memory_space<vmem>>, %arg8: memref<2x16xbf16, #tpu.memory_space<vmem>>, %arg9: memref<2x1xf32, #tpu.memory_space<vmem>>, %arg10: memref<2x128xf32, #tpu.memory_space<vmem>>) attributes {dimension_semantics = [#tpu.dimension_semantics<parallel>], iteration_bounds = array<i64: 1>, scalar_prefetch = 0 : i64, scratch_operands = 0 : i64, tpu.core_type = #tpu.core_type<tc>, window_params = [{transform_indices = @transform_0, window_bounds = array<i64: 128, 16>}, {pipeline_mode = #tpu.pipeline_mode<synchronous>, transform_indices = @transform_1, window_bounds = array<i64: 64, 16>}, {pipeline_mode = #tpu.pipeline_mode<synchronous>, transform_indices = @transform_2, window_bounds = array<i64: 64, 1>}, {pipeline_mode = #tpu.pipeline_mode<synchronous>, transform_indices = @transform_3, window_bounds = array<i64: 32, 64>}, {pipeline_mode = #tpu.pipeline_mode<synchronous>, transform_indices = @transform_4, window_bounds = array<i64: 32, 1>}, {pipeline_mode = #tpu.pipeline_mode<synchronous>, transform_indices = @transform_5, window_bounds = array<i64: 16, 32>}, {pipeline_mode = #tpu.pipeline_mode<synchronous>, transform_indices = @transform_6, window_bounds = array<i64: 16, 1>}, {pipeline_mode = #tpu.pipeline_mode<synchronous>, transform_indices = @transform_7, window_bounds = array<i64: 2, 16>}, {pipeline_mode = #tpu.pipeline_mode<synchronous>, transform_indices = @transform_8, window_bounds = array<i64: 2, 1>}, {transform_indices = @transform_9, window_bounds = array<i64: 2, 128>}]} {
    %c0 = arith.constant 0 : index
    %c0_0 = arith.constant 0 : index
    %0 = vector.load %arg1[%c0, %c0_0] : memref<128x16xf32, #tpu.memory_space<vmem>>, vector<128x16xf32>
    %1 = arith.truncf %0 : vector<128x16xf32> to vector<128x16xbf16>
    %c0_1 = arith.constant 0 : index
    %c0_2 = arith.constant 0 : index
    %2 = vector.load %arg2[%c0_1, %c0_2] : memref<64x16xbf16, #tpu.memory_space<vmem>>, vector<64x16xbf16>
    %cst = arith.constant dense<0.000000e+00> : vector<64x128xf32>
    %3 = tpu.matmul %2, %1, %cst {dimension_numbers = #tpu.dot_dimension_numbers<[1], [1], [0], [0], [0, 0, 1, 0], [], []>} : vector<64x16xbf16>, vector<128x16xbf16>, vector<64x128xf32> -> vector<64x128xf32>
    %c0_3 = arith.constant 0 : index
    %c0_4 = arith.constant 0 : index
    %4 = vector.load %arg3[%c0_3, %c0_4] : memref<64x1xf32, #tpu.memory_space<vmem>>, vector<64x1xf32>
    %5 = vector.broadcast %4 : vector<64x1xf32> to vector<64x128xf32>
    %6 = arith.addf %3, %5 : vector<64x128xf32>
    %cst_5 = arith.constant 0.000000e+00 : f32
    %7 = vector.broadcast %cst_5 : f32 to vector<64x128xf32>
    %8 = arith.maximumf %6, %7 : vector<64x128xf32>
    %c0_6 = arith.constant 0 : index
    %c0_7 = arith.constant 0 : index
    %9 = vector.load %arg4[%c0_6, %c0_7] : memref<32x64xbf16, #tpu.memory_space<vmem>>, vector<32x64xbf16>
    %10 = arith.truncf %8 : vector<64x128xf32> to vector<64x128xbf16>
    %cst_8 = arith.constant dense<0.000000e+00> : vector<32x128xf32>
    %11 = tpu.matmul %9, %10, %cst_8 {dimension_numbers = #tpu.dot_dimension_numbers<[1], [0], [0], [1], [0, 0, 1, 1], [], []>} : vector<32x64xbf16>, vector<64x128xbf16>, vector<32x128xf32> -> vector<32x128xf32>
    %c0_9 = arith.constant 0 : index
    %c0_10 = arith.constant 0 : index
    %12 = vector.load %arg5[%c0_9, %c0_10] : memref<32x1xf32, #tpu.memory_space<vmem>>, vector<32x1xf32>
    %13 = vector.broadcast %12 : vector<32x1xf32> to vector<32x128xf32>
    %14 = arith.addf %11, %13 : vector<32x128xf32>
    %cst_11 = arith.constant 0.000000e+00 : f32
    %15 = vector.broadcast %cst_11 : f32 to vector<32x128xf32>
    %16 = arith.maximumf %14, %15 : vector<32x128xf32>
    %c0_12 = arith.constant 0 : index
    %c0_13 = arith.constant 0 : index
    %17 = vector.load %arg6[%c0_12, %c0_13] : memref<16x32xbf16, #tpu.memory_space<vmem>>, vector<16x32xbf16>
    %18 = arith.truncf %16 : vector<32x128xf32> to vector<32x128xbf16>
    %cst_14 = arith.constant dense<0.000000e+00> : vector<16x128xf32>
    %19 = tpu.matmul %17, %18, %cst_14 {dimension_numbers = #tpu.dot_dimension_numbers<[1], [0], [0], [1], [0, 0, 1, 1], [], []>} : vector<16x32xbf16>, vector<32x128xbf16>, vector<16x128xf32> -> vector<16x128xf32>
    %c0_15 = arith.constant 0 : index
    %c0_16 = arith.constant 0 : index
    %20 = vector.load %arg7[%c0_15, %c0_16] : memref<16x1xf32, #tpu.memory_space<vmem>>, vector<16x1xf32>
    %21 = vector.broadcast %20 : vector<16x1xf32> to vector<16x128xf32>
    %22 = arith.addf %19, %21 : vector<16x128xf32>
    %cst_17 = arith.constant 0.000000e+00 : f32
    %23 = vector.broadcast %cst_17 : f32 to vector<16x128xf32>
    %24 = arith.maximumf %22, %23 : vector<16x128xf32>
    %c0_18 = arith.constant 0 : index
    %c0_19 = arith.constant 0 : index
    %25 = vector.load %arg8[%c0_18, %c0_19] : memref<2x16xbf16, #tpu.memory_space<vmem>>, vector<2x16xbf16>
    %26 = arith.truncf %24 : vector<16x128xf32> to vector<16x128xbf16>
    %cst_20 = arith.constant dense<0.000000e+00> : vector<2x128xf32>
    %27 = tpu.matmul %25, %26, %cst_20 {dimension_numbers = #tpu.dot_dimension_numbers<[1], [0], [0], [1], [0, 0, 1, 1], [], []>} : vector<2x16xbf16>, vector<16x128xbf16>, vector<2x128xf32> -> vector<2x128xf32>
    %c0_21 = arith.constant 0 : index
    %c0_22 = arith.constant 0 : index
    %28 = vector.load %arg9[%c0_21, %c0_22] : memref<2x1xf32, #tpu.memory_space<vmem>>, vector<2x1xf32>
    %29 = vector.broadcast %28 : vector<2x1xf32> to vector<2x128xf32>
    %30 = arith.addf %27, %29 : vector<2x128xf32>
    %c0_23 = arith.constant 0 : index
    %c0_24 = arith.constant 0 : index
    %31 = vector.load %arg10[%c0_23, %c0_24] : memref<2x128xf32, #tpu.memory_space<vmem>>, vector<2x128xf32>
    tpu.vector_store %arg10[%c0_23, %c0_24], %30 {strides = array<i32>} : memref<2x128xf32, #tpu.memory_space<vmem>>, vector<2x128xf32>,
    return
  }
  func.func @transform_0(%arg0: i32) -> (i32, i32) {
    %c0_i32 = arith.constant 0 : i32
    %c0_i32_0 = arith.constant 0 : i32
    return %arg0, %c0_i32 : i32, i32
  }
  func.func @transform_1(%arg0: i32) -> (i32, i32) {
    %c0_i32 = arith.constant 0 : i32
    %c0_i32_0 = arith.constant 0 : i32
    %c0_i32_1 = arith.constant 0 : i32
    return %c0_i32, %c0_i32_0 : i32, i32
  }
  func.func @transform_2(%arg0: i32) -> (i32, i32) {
    %c0_i32 = arith.constant 0 : i32
    %c0_i32_0 = arith.constant 0 : i32
    %c0_i32_1 = arith.constant 0 : i32
    return %c0_i32, %c0_i32_0 : i32, i32
  }
  func.func @transform_3(%arg0: i32) -> (i32, i32) {
    %c0_i32 = arith.constant 0 : i32
    %c0_i32_0 = arith.constant 0 : i32
    %c0_i32_1 = arith.constant 0 : i32
    return %c0_i32, %c0_i32_0 : i32, i32
  }
  func.func @transform_4(%arg0: i32) -> (i32, i32) {
    %c0_i32 = arith.constant 0 : i32
    %c0_i32_0 = arith.constant 0 : i32
    %c0_i32_1 = arith.constant 0 : i32
    return %c0_i32, %c0_i32_0 : i32, i32
  }
  func.func @transform_5(%arg0: i32) -> (i32, i32) {
    %c0_i32 = arith.constant 0 : i32
    %c0_i32_0 = arith.constant 0 : i32
    %c0_i32_1 = arith.constant 0 : i32
    return %c0_i32, %c0_i32_0 : i32, i32
  }
  func.func @transform_6(%arg0: i32) -> (i32, i32) {
    %c0_i32 = arith.constant 0 : i32
    %c0_i32_0 = arith.constant 0 : i32
    %c0_i32_1 = arith.constant 0 : i32
    return %c0_i32, %c0_i32_0 : i32, i32
  }
  func.func @transform_7(%arg0: i32) -> (i32, i32) {
    %c0_i32 = arith.constant 0 : i32
    %c0_i32_0 = arith.constant 0 : i32
    %c0_i32_1 = arith.constant 0 : i32
    return %c0_i32, %c0_i32_0 : i32, i32
  }
  func.func @transform_8(%arg0: i32) -> (i32, i32) {
    %c0_i32 = arith.constant 0 : i32
    %c0_i32_0 = arith.constant 0 : i32
    %c0_i32_1 = arith.constant 0 : i32
    return %c0_i32, %c0_i32_0 : i32, i32
  }
  func.func @transform_9(%arg0: i32) -> (i32, i32) {
    %c0_i32 = arith.constant 0 : i32
    %c0_i32_0 = arith.constant 0 : i32
    return %c0_i32, %arg0 : i32, i32
  }
}

</mosaic_0001>

<llo_original>
// kernel: phishing_url_classifier.1
$region0: #{phishing_url_classifier.1}
  #allocation0 [shape = 'u32[]', space=smem, size = 0x4, offset = 0x4, fixed_abs, tag = 'smem constant byte address 0x4 - core index']
  #allocation1 [shape = 'u32[144,128]{1,0:T(1,128)}', space=vmem, size = 0x12000, scoped, tag = 'internal scratch']
  %s0 = inlined_call_operand.vmem [shape: f32[128,16], index: 0, kind: input, shape index: {}]
  %s1 = inlined_call_operand.vmem [shape: bf16[64,16], index: 1, kind: input, shape index: {}]
  %s2 = inlined_call_operand.vmem [shape: f32[64,1], index: 2, kind: input, shape index: {}]
  %s3 = inlined_call_operand.vmem [shape: bf16[32,64], index: 3, kind: input, shape index: {}]
  %s4 = inlined_call_operand.vmem [shape: f32[32,1], index: 4, kind: input, shape index: {}]
  %s5 = inlined_call_operand.vmem [shape: bf16[16,32], index: 5, kind: input, shape index: {}]
  %s6 = inlined_call_operand.vmem [shape: f32[16,1], index: 6, kind: input, shape index: {}]
  %s7 = inlined_call_operand.vmem [shape: bf16[2,16], index: 7, kind: input, shape index: {}]
  %s8 = inlined_call_operand.vmem [shape: f32[2,1], index: 8, kind: input, shape index: {}]
  %s9 = inlined_call_operand.vmem [shape: f32[2,128], index: 9, kind: output, shape index: {}]
  %s10 = sld [smem:[#allocation0]]
  $region46: #{phishing_url_classifier.1} parent=0
    _
  %s12 = ssub.s32 1, %s10
  %s13 = scalar_select 0, %s12, %s10
  // Predicated region
  $region2: #{phishing_url_classifier.1} parent=0 // pred_check
    _
  $region3: #{phishing_url_classifier.1} parent=0 // pred_check_branch
    %15 = sbr.rel (0) target = $region5
  $region4: #{phishing_url_classifier.1} parent=0 // pred_region
    _
  $region5: #{phishing_url_classifier.1} parent=0 // pred_fallthru
    _
  // Predicated region
  $region6: #{phishing_url_classifier.1} parent=0 // pred_check
    _
  $region7: #{phishing_url_classifier.1} parent=0 // pred_check_branch
    %17 = sbr.rel (0) target = $region9
  $region8: #{phishing_url_classifier.1} parent=0 // pred_region
    _
  $region9: #{phishing_url_classifier.1} parent=0 // pred_fallthru
    _
  // Predicated region
  $region10: #{phishing_url_classifier.1} parent=0 // pred_check
    _
  $region11: #{phishing_url_classifier.1} parent=0 // pred_check_branch
    %19 = sbr.rel (0) target = $region13
  $region12: #{phishing_url_classifier.1} parent=0 // pred_region
    _
  $region13: #{phishing_url_classifier.1} parent=0 // pred_fallthru
    _
  // Predicated region
  $region14: #{phishing_url_classifier.1} parent=0 // pred_check
    _
  $region15: #{phishing_url_classifier.1} parent=0 // pred_check_branch
    %21 = sbr.rel (0) target = $region17
  $region16: #{phishing_url_classifier.1} parent=0 // pred_region
    _
  $region17: #{phishing_url_classifier.1} parent=0 // pred_fallthru
    _
  // Predicated region
  $region18: #{phishing_url_classifier.1} parent=0 // pred_check
    _
  $region19: #{phishing_url_classifier.1} parent=0 // pred_check_branch
    %23 = sbr.rel (0) target = $region21
  $region20: #{phishing_url_classifier.1} parent=0 // pred_region
    _
  $region21: #{phishing_url_classifier.1} parent=0 // pred_fallthru
    _
  // Predicated region
  $region22: #{phishing_url_classifier.1} parent=0 // pred_check
    _
  $region23: #{phishing_url_classifier.1} parent=0 // pred_check_branch
    %25 = sbr.rel (0) target = $region25
  $region24: #{phishing_url_classifier.1} parent=0 // pred_region
    _
  $region25: #{phishing_url_classifier.1} parent=0 // pred_fallthru
    _
  // Predicated region
  $region26: #{phishing_url_classifier.1} parent=0 // pred_check
    _
  $region27: #{phishing_url_classifier.1} parent=0 // pred_check_branch
    %27 = sbr.rel (0) target = $region29
  $region28: #{phishing_url_classifier.1} parent=0 // pred_region
    _
  $region29: #{phishing_url_classifier.1} parent=0 // pred_fallthru
    _
  // Predicated region
  $region30: #{phishing_url_classifier.1} parent=0 // pred_check
    _
  $region31: #{phishing_url_classifier.1} parent=0 // pred_check_branch
    %29 = sbr.rel (0) target = $region33
  $region32: #{phishing_url_classifier.1} parent=0 // pred_region
    _
  $region33: #{phishing_url_classifier.1} parent=0 // pred_fallthru
    _
  // Predicated region
  $region34: #{phishing_url_classifier.1} parent=0 // pred_check
    _
  $region35: #{phishing_url_classifier.1} parent=0 // pred_check_branch
    %31 = sbr.rel (0) target = $region37
  $region36: #{phishing_url_classifier.1} parent=0 // pred_region
    _
  $region37: #{phishing_url_classifier.1} parent=0 // pred_fallthru
    _
  %v33 = vld [vmem:[%s0] sm:$0xff]
  %v34 = vld [vmem:[%s0 + $0x8] sm:$0xff]
  %v35 = vld [vmem:[%s0 + $0x10] sm:$0xff]
  %v36 = vld [vmem:[%s0 + $0x18] sm:$0xff]
  %v37 = vld [vmem:[%s0 + $0x20] sm:$0xff]
  %v38 = vld [vmem:[%s0 + $0x28] sm:$0xff]
  %v39 = vld [vmem:[%s0 + $0x30] sm:$0xff]
  %v40 = vld [vmem:[%s0 + $0x38] sm:$0xff]
  %v41 = vld [vmem:[%s0 + $0x40] sm:$0xff]
  %v42 = vld [vmem:[%s0 + $0x48] sm:$0xff]
  %v43 = vld [vmem:[%s0 + $0x50] sm:$0xff]
  %v44 = vld [vmem:[%s0 + $0x58] sm:$0xff]
  %v45 = vld [vmem:[%s0 + $0x60] sm:$0xff]
  %v46 = vld [vmem:[%s0 + $0x68] sm:$0xff]
  %v47 = vld [vmem:[%s0 + $0x70] sm:$0xff]
  %v48 = vld [vmem:[%s0 + $0x78] sm:$0xff]
  %v49 = vpack.c.bf16 %v34, %v33
  %v50 = vpack.c.bf16 %v36, %v35
  %v51 = vpack.c.bf16 %v38, %v37
  %v52 = vpack.c.bf16 %v40, %v39
  %v53 = vpack.c.bf16 %v42, %v41
  %v54 = vpack.c.bf16 %v44, %v43
  %v55 = vpack.c.bf16 %v46, %v45
  %v56 = vpack.c.bf16 %v48, %v47
  %v57 = vld [vmem:[%s1] sm:$0xf]
  %v58 = vld [vmem:[%s1 + $0x4] sm:$0xf]
  %v59 = vld [vmem:[%s1 + $0x8] sm:$0xf]
  %v60 = vld [vmem:[%s1 + $0xc] sm:$0xf]
  %v61 = vld [vmem:[%s1 + $0x10] sm:$0xf]
  %v62 = vld [vmem:[%s1 + $0x14] sm:$0xf]
  %v63 = vld [vmem:[%s1 + $0x18] sm:$0xf]
  %v64 = vld [vmem:[%s1 + $0x1c] sm:$0xf]
  %v65 = vld [vmem:[%s2] sm:$0xff]
  %v66 = vld [vmem:[%s2 + $0x8] sm:$0xff]
  %v67 = vld [vmem:[%s2 + $0x10] sm:$0xff]
  %v68 = vld [vmem:[%s2 + $0x18] sm:$0xff]
  %v69 = vld [vmem:[%s2 + $0x20] sm:$0xff]
  %v70 = vld [vmem:[%s2 + $0x28] sm:$0xff]
  %v71 = vld [vmem:[%s2 + $0x30] sm:$0xff]
  %v72 = vld [vmem:[%s2 + $0x38] sm:$0xff]
  %74 = vset.pattern.permute.xlu0 0
  %75 = vperm.xlu0 %74, %v65
  %v76 = vpop.permute.xlu0 %75
  %79 = vset.pattern.permute.xlu0 0
  %80 = vperm.xlu0 %79, %v66
  %v81 = vpop.permute.xlu0 %80
  %84 = vset.pattern.permute.xlu0 0
  %85 = vperm.xlu0 %84, %v67
  %v86 = vpop.permute.xlu0 %85
  %89 = vset.pattern.permute.xlu0 0
  %90 = vperm.xlu0 %89, %v68
  %v91 = vpop.permute.xlu0 %90
  %94 = vset.pattern.permute.xlu0 0
  %95 = vperm.xlu0 %94, %v69
  %v96 = vpop.permute.xlu0 %95
  %99 = vset.pattern.permute.xlu0 0
  %100 = vperm.xlu0 %99, %v70
  %v101 = vpop.permute.xlu0 %100
  %104 = vset.pattern.permute.xlu0 0
  %105 = vperm.xlu0 %104, %v71
  %v106 = vpop.permute.xlu0 %105
  %109 = vset.pattern.permute.xlu0 0
  %110 = vperm.xlu0 %109, %v72
  %v111 = vpop.permute.xlu0 %110
  %v121 = vunpack.c.l.b16 %v57
  %v122 = vunpack.c.l.b16 %v58
  %v123 = vunpack.c.l.b16 %v59
  %v124 = vunpack.c.l.b16 %v60
  %v125 = vunpack.c.l.b16 %v61
  %v126 = vunpack.c.l.b16 %v62
  %v127 = vunpack.c.l.b16 %v63
  %v128 = vunpack.c.l.b16 %v64
  %v129 = vpack.c.b16 %v122, %v121
  %v130 = vpack.c.b16 %v124, %v123
  %v131 = vpack.c.b16 %v126, %v125
  %v132 = vpack.c.b16 %v128, %v127
  %vm133 = vcmask 130048
  %v135 = vsel %vm133, %v129, 0
  %v138 = vsel %vm133, %v130, 0
  %v141 = vsel %vm133, %v131, 0
  %v144 = vsel %vm133, %v132, 0
  %v147 = vsel %vm133, %v49, 0
  %v150 = vsel %vm133, %v50, 0
  %v153 = vsel %vm133, %v51, 0
  %v156 = vsel %vm133, %v52, 0
  %v159 = vsel %vm133, %v53, 0
  %v162 = vsel %vm133, %v54, 0
  %v165 = vsel %vm133, %v55, 0
  %v168 = vsel %vm133, %v56, 0
  %170 = vmatprep.subr.bf16.mxu0 0
  %171 = vmatpush1.bf16.xpose.msra.mxu0 %v147
  %172 = vmatprep.subr.bf16.mxu0 0
  %173 = vmatpush1.bf16.xpose.msra.mxu0 %v150
  %174 = vmatprep.subr.bf16.mxu0 0
  %175 = vmatpush1.bf16.xpose.msra.mxu0 %v153
  %176 = vmatprep.subr.bf16.mxu0 0
  %177 = vmatpush1.bf16.xpose.msra.mxu0 %v156
  %178 = vmatprep.subr.bf16.mxu0 0
  %179 = vmatpush1.bf16.xpose.msra.mxu0 %v159
  %180 = vmatprep.subr.bf16.mxu0 0
  %181 = vmatpush1.bf16.xpose.msra.mxu0 %v162
  %182 = vmatprep.subr.bf16.mxu0 0
  %183 = vmatpush1.bf16.xpose.msra.mxu0 %v165
  %184 = vmatprep.subr.bf16.mxu0 0
  %185 = vmatpush1.bf16.xpose.msra.mxu0 %v168
  %186 = vmatprep.subr.bf16.mxu0 0
  %187 = vmatpush1.bf16.xpose.msra.mxu0 0
  %188 = vmatprep.subr.bf16.mxu0 0
  %189 = vmatpush1.bf16.xpose.msra.mxu0 0
  %190 = vmatprep.subr.bf16.mxu0 0
  %191 = vmatpush1.bf16.xpose.msra.mxu0 0
  %192 = vmatprep.subr.bf16.mxu0 0
  %193 = vmatpush1.bf16.xpose.msra.mxu0 0
  %194 = vmatprep.subr.bf16.mxu0 0
  %195 = vmatpush1.bf16.xpose.msra.mxu0 0
  %196 = vmatprep.subr.bf16.mxu0 0
  %197 = vmatpush1.bf16.xpose.msra.mxu0 0
  %198 = vmatprep.subr.bf16.mxu0 0
  %199 = vmatpush1.bf16.xpose.msra.mxu0 0
  %200 = vmatprep.subr.bf16.mxu0 0
  %201 = vmatpush1.bf16.xpose.msra.mxu0 0
  %202 = vmatprep.mubr.bf16.mxu0 0
  %203 = vmatmul.mubr.bf16.gmra.mrb[0].mxu0 %v135
  %v204 = vpop.f32.mrb[0].mxu0
  %v205 = vadd.f32 %v76, %v204
  %v206 = vpop.f32.mrb[0].mxu0
  %v207 = vpop.f32.mrb[0].mxu0
  %v208 = vadd.f32 %v81, %v207
  %v209 = vpop.f32.mrb[0].mxu0
  %210 = vmatprep.mubr.bf16.mxu0 0
  %211 = vmatmul.mubr.bf16.gmra.mrb[0].mxu0 %v138
  %v212 = vpop.f32.mrb[0].mxu0
  %v213 = vadd.f32 %v86, %v212
  %v214 = vpop.f32.mrb[0].mxu0
  %v215 = vpop.f32.mrb[0].mxu0
  %v216 = vadd.f32 %v91, %v215
  %v217 = vpop.f32.mrb[0].mxu0
  %218 = vmatprep.mubr.bf16.mxu0 0
  %219 = vmatmul.mubr.bf16.gmra.mrb[0].mxu0 %v141
  %v220 = vpop.f32.mrb[0].mxu0
  %v221 = vadd.f32 %v96, %v220
  %v222 = vpop.f32.mrb[0].mxu0
  %v223 = vpop.f32.mrb[0].mxu0
  %v224 = vadd.f32 %v101, %v223
  %v225 = vpop.f32.mrb[0].mxu0
  %226 = vmatprep.mubr.bf16.mxu0 0
  %227 = vmatmul.mubr.bf16.gmra.mrb[0].mxu0 %v144
  %v228 = vpop.f32.mrb[0].mxu0
  %v229 = vadd.f32 %v106, %v228
  %v230 = vpop.f32.mrb[0].mxu0
  %v231 = vpop.f32.mrb[0].mxu0
  %v232 = vadd.f32 %v111, %v231
  %v233 = vpop.f32.mrb[0].mxu0
  %234 = vdwg.mxu0
  %v235 = vmax.f32 %v205, 0.0
  %v236 = vmax.f32 %v208, 0.0
  %v237 = vmax.f32 %v213, 0.0
  %v238 = vmax.f32 %v216, 0.0
  %v239 = vmax.f32 %v221, 0.0
  %v240 = vmax.f32 %v224, 0.0
  %v241 = vmax.f32 %v229, 0.0
  %v242 = vmax.f32 %v232, 0.0
  %v243 = vld [vmem:[%s3] sm:$0xf]
  %v244 = vld [vmem:[%s3 + $0x4] sm:$0xf]
  %v245 = vld [vmem:[%s3 + $0x8] sm:$0xf]
  %v246 = vld [vmem:[%s3 + $0xc] sm:$0xf]
  %v247 = vpack.c.bf16 %v236, %v235
  %v248 = vpack.c.bf16 %v238, %v237
  %v249 = vpack.c.bf16 %v240, %v239
  %v250 = vpack.c.bf16 %v242, %v241
  %v251 = vld [vmem:[%s4] sm:$0xff]
  %v252 = vld [vmem:[%s4 + $0x8] sm:$0xff]
  %v253 = vld [vmem:[%s4 + $0x10] sm:$0xff]
  %v254 = vld [vmem:[%s4 + $0x18] sm:$0xff]
  %256 = vset.pattern.permute.xlu0 0
  %257 = vperm.xlu0 %256, %v251
  %v258 = vpop.permute.xlu0 %257
  %261 = vset.pattern.permute.xlu0 0
  %262 = vperm.xlu0 %261, %v252
  %v263 = vpop.permute.xlu0 %262
  %266 = vset.pattern.permute.xlu0 0
  %267 = vperm.xlu0 %266, %v253
  %v268 = vpop.permute.xlu0 %267
  %271 = vset.pattern.permute.xlu0 0
  %272 = vperm.xlu0 %271, %v254
  %v273 = vpop.permute.xlu0 %272
  %v279 = vunpack.c.l.b16 %v243
  %v280 = vunpack.c.l.b16 %v244
  %v281 = vunpack.c.l.b16 %v245
  %v282 = vunpack.c.l.b16 %v246
  %v283 = vpack.c.b16 %v280, %v279
  %v284 = vpack.c.b16 %v282, %v281
  %vm285 = vcmask 523264
  %v287 = vsel %vm285, %v283, 0
  %v290 = vsel %vm285, %v284, 0
  %292 = vmatprep.subr.bf16.mxu0 0
  %293 = vmatpush1.bf16.msra.mxu0 %v247
  %294 = vmatprep.subr.bf16.mxu0 0
  %295 = vmatpush1.bf16.msra.mxu0 %v248
  %296 = vmatprep.subr.bf16.mxu0 0
  %297 = vmatpush1.bf16.msra.mxu0 %v249
  %298 = vmatprep.subr.bf16.mxu0 0
  %299 = vmatpush1.bf16.msra.mxu0 %v250
  %300 = vmatprep.subr.bf16.mxu0 0
  %301 = vmatpush1.bf16.msra.mxu0 0
  %302 = vmatprep.subr.bf16.mxu0 0
  %303 = vmatpush1.bf16.msra.mxu0 0
  %304 = vmatprep.subr.bf16.mxu0 0
  %305 = vmatpush1.bf16.msra.mxu0 0
  %306 = vmatprep.subr.bf16.mxu0 0
  %307 = vmatpush1.bf16.msra.mxu0 0
  %308 = vmatprep.subr.bf16.mxu0 0
  %309 = vmatpush1.bf16.msra.mxu0 0
  %310 = vmatprep.subr.bf16.mxu0 0
  %311 = vmatpush1.bf16.msra.mxu0 0
  %312 = vmatprep.subr.bf16.mxu0 0
  %313 = vmatpush1.bf16.msra.mxu0 0
  %314 = vmatprep.subr.bf16.mxu0 0
  %315 = vmatpush1.bf16.msra.mxu0 0
  %316 = vmatprep.subr.bf16.mxu0 0
  %317 = vmatpush1.bf16.msra.mxu0 0
  %318 = vmatprep.subr.bf16.mxu0 0
  %319 = vmatpush1.bf16.msra.mxu0 0
  %320 = vmatprep.subr.bf16.mxu0 0
  %321 = vmatpush1.bf16.msra.mxu0 0
  %322 = vmatprep.subr.bf16.mxu0 0
  %323 = vmatpush1.bf16.msra.mxu0 0
  %324 = vmatprep.mubr.bf16.mxu0 0
  %325 = vmatmul.mubr.bf16.gmra.mrb[0].mxu0 %v287
  %v326 = vpop.f32.mrb[0].mxu0
  %v327 = vadd.f32 %v258, %v326
  %v328 = vpop.f32.mrb[0].mxu0
  %v329 = vpop.f32.mrb[0].mxu0
  %v330 = vadd.f32 %v263, %v329
  %v331 = vpop.f32.mrb[0].mxu0
  %332 = vmatprep.mubr.bf16.mxu0 0
  %333 = vmatmul.mubr.bf16.gmra.mrb[0].mxu0 %v290
  %v334 = vpop.f32.mrb[0].mxu0
  %v335 = vadd.f32 %v268, %v334
  %v336 = vpop.f32.mrb[0].mxu0
  %v337 = vpop.f32.mrb[0].mxu0
  %v338 = vadd.f32 %v273, %v337
  %v339 = vpop.f32.mrb[0].mxu0
  %340 = vdwg.mxu0
  %v341 = vmax.f32 %v327, 0.0
  %v342 = vmax.f32 %v330, 0.0
  %v343 = vmax.f32 %v335, 0.0
  %v344 = vmax.f32 %v338, 0.0
  %v345 = vld [vmem:[%s5] sm:$0xf]
  %v346 = vld [vmem:[%s5 + $0x4] sm:$0xf]
  %v347 = vpack.c.bf16 %v342, %v341
  %v348 = vpack.c.bf16 %v344, %v343
  %v349 = vld [vmem:[%s6] sm:$0xff]
  %v350 = vld [vmem:[%s6 + $0x8] sm:$0xff]
  %352 = vset.pattern.permute.xlu0 0
  %353 = vperm.xlu0 %352, %v349
  %v354 = vpop.permute.xlu0 %353
  %357 = vset.pattern.permute.xlu0 0
  %358 = vperm.xlu0 %357, %v350
  %v359 = vpop.permute.xlu0 %358
  %v363 = vunpack.c.l.b16 %v345
  %v364 = vunpack.c.l.b16 %v346
  %v365 = vpack.c.b16 %v364, %v363
  %vm366 = vcmask 261120
  %v368 = vsel %vm366, %v365, 0
  %370 = vmatprep.subr.bf16.mxu0 0
  %371 = vmatpush1.bf16.msra.mxu0 %v347
  %372 = vmatprep.subr.bf16.mxu0 0
  %373 = vmatpush1.bf16.msra.mxu0 %v348
  %374 = vmatprep.subr.bf16.mxu0 0
  %375 = vmatpush1.bf16.msra.mxu0 0
  %376 = vmatprep.subr.bf16.mxu0 0
  %377 = vmatpush1.bf16.msra.mxu0 0
  %378 = vmatprep.subr.bf16.mxu0 0
  %379 = vmatpush1.bf16.msra.mxu0 0
  %380 = vmatprep.subr.bf16.mxu0 0
  %381 = vmatpush1.bf16.msra.mxu0 0
  %382 = vmatprep.subr.bf16.mxu0 0
  %383 = vmatpush1.bf16.msra.mxu0 0
  %384 = vmatprep.subr.bf16.mxu0 0
  %385 = vmatpush1.bf16.msra.mxu0 0
  %386 = vmatprep.subr.bf16.mxu0 0
  %387 = vmatpush1.bf16.msra.mxu0 0
  %388 = vmatprep.subr.bf16.mxu0 0
  %389 = vmatpush1.bf16.msra.mxu0 0
  %390 = vmatprep.subr.bf16.mxu0 0
  %391 = vmatpush1.bf16.msra.mxu0 0
  %392 = vmatprep.subr.bf16.mxu0 0
  %393 = vmatpush1.bf16.msra.mxu0 0
  %394 = vmatprep.subr.bf16.mxu0 0
  %395 = vmatpush1.bf16.msra.mxu0 0
  %396 = vmatprep.subr.bf16.mxu0 0
  %397 = vmatpush1.bf16.msra.mxu0 0
  %398 = vmatprep.subr.bf16.mxu0 0
  %399 = vmatpush1.bf16.msra.mxu0 0
  %400 = vmatprep.subr.bf16.mxu0 0
  %401 = vmatpush1.bf16.msra.mxu0 0
  %402 = vmatprep.mubr.bf16.mxu0 0
  %403 = vmatmul.mubr.bf16.gmra.mrb[0].mxu0 %v368
  %v404 = vpop.f32.mrb[0].mxu0
  %v405 = vadd.f32 %v354, %v404
  %v406 = vpop.f32.mrb[0].mxu0
  %v407 = vpop.f32.mrb[0].mxu0
  %v408 = vadd.f32 %v359, %v407
  %v409 = vpop.f32.mrb[0].mxu0
  %410 = vdwg.mxu0
  %v411 = vmax.f32 %v405, 0.0
  %v412 = vmax.f32 %v408, 0.0
  %v413 = vld [vmem:[%s7] sm:$0x1]
  %v414 = vpack.c.bf16 %v412, %v411
  %v415 = vld [vmem:[%s8] sm:$0x3]
  %417 = vset.pattern.permute.xlu0 0
  %418 = vperm.xlu0 %417, %v415
  %v419 = vpop.permute.xlu0 %418
  %v422 = vsel %vm133, %v413, 0
  %424 = vmatprep.subr.bf16.mxu0 0
  %425 = vmatpush1.bf16.msra.mxu0 %v414
  %426 = vmatprep.subr.bf16.mxu0 0
  %427 = vmatpush1.bf16.msra.mxu0 0
  %428 = vmatprep.subr.bf16.mxu0 0
  %429 = vmatpush1.bf16.msra.mxu0 0
  %430 = vmatprep.subr.bf16.mxu0 0
  %431 = vmatpush1.bf16.msra.mxu0 0
  %432 = vmatprep.subr.bf16.mxu0 0
  %433 = vmatpush1.bf16.msra.mxu0 0
  %434 = vmatprep.subr.bf16.mxu0 0
  %435 = vmatpush1.bf16.msra.mxu0 0
  %436 = vmatprep.subr.bf16.mxu0 0
  %437 = vmatpush1.bf16.msra.mxu0 0
  %438 = vmatprep.subr.bf16.mxu0 0
  %439 = vmatpush1.bf16.msra.mxu0 0
  %440 = vmatprep.subr.bf16.mxu0 0
  %441 = vmatpush1.bf16.msra.mxu0 0
  %442 = vmatprep.subr.bf16.mxu0 0
  %443 = vmatpush1.bf16.msra.mxu0 0
  %444 = vmatprep.subr.bf16.mxu0 0
  %445 = vmatpush1.bf16.msra.mxu0 0
  %446 = vmatprep.subr.bf16.mxu0 0
  %447 = vmatpush1.bf16.msra.mxu0 0
  %448 = vmatprep.subr.bf16.mxu0 0
  %449 = vmatpush1.bf16.msra.mxu0 0
  %450 = vmatprep.subr.bf16.mxu0 0
  %451 = vmatpush1.bf16.msra.mxu0 0
  %452 = vmatprep.subr.bf16.mxu0 0
  %453 = vmatpush1.bf16.msra.mxu0 0
  %454 = vmatprep.subr.bf16.mxu0 0
  %455 = vmatpush1.bf16.msra.mxu0 0
  %456 = vmatprep.mubr.bf16.mxu0 0
  %457 = vmatmul.mubr.bf16.gmra.mrb[0].mxu0 %v422
  %v458 = vpop.f32.mrb[0].mxu0
  %v459 = vadd.f32 %v419, %v458
  %v460 = vpop.f32.mrb[0].mxu0
  %v461 = vpop.f32.mrb[0].mxu0
  %v462 = vpop.f32.mrb[0].mxu0
  %463 = vdwg.mxu0
  %464 = vst [vmem:[%s9] sm:$0x3] %v459
  // Predicated region
  $region38: #{phishing_url_classifier.1} parent=0 // pred_check
    _
  $region39: #{phishing_url_classifier.1} parent=0 // pred_check_branch
    %466 = sbr.rel (0) target = $region41
  $region40: #{phishing_url_classifier.1} parent=0 // pred_region
    _
  $region41: #{phishing_url_classifier.1} parent=0 // pred_fallthru
    _
  // Predicated region
  $region42: #{phishing_url_classifier.1} parent=0 // pred_check
    _
  $region43: #{phishing_url_classifier.1} parent=0 // pred_check_branch
    %468 = sbr.rel (0) target = $region45
  $region44: #{phishing_url_classifier.1} parent=0 // pred_region
    _
  $region45: #{phishing_url_classifier.1} parent=0 // pred_fallthru
    _

</llo_original>
